<compile_context>
chip_gen: v7x
topology: tpu7x:2x2x1
jax: 0.10.0
libtpu: 0.0.40
codegen_flags: <defaults>
</compile_context>

<pallas_src>
import jax
import jax.numpy as jnp
from jax import lax
from jax.experimental import pallas as pl
from jax.experimental.pallas import tpu as pltpu


def _round_up(x, m):
    return ((x + m - 1) // m) * m


def _cdiv(a, b):
    return (a + b - 1) // b


def _actor_kernel(ma_ref, s_ref, w1_ref, b1_ref, w2_ref, b2_ref, w3t_ref, b3t_ref,
                  out_ref):
    max_action = ma_ref[0, 0]                       # f32 scalar from SMEM

    # l1: Linear(state_dim, 256) + ReLU   (bf16 MXU, f32 accumulate)
    x = s_ref[...].astype(jnp.bfloat16)
    h1 = jnp.dot(x, w1_ref[...], preferred_element_type=jnp.float32) + b1_ref[...]
    h1 = jnp.maximum(h1, 0.0).astype(jnp.bfloat16)

    # l2: Linear(256, 256) + ReLU
    h2 = jnp.dot(h1, w2_ref[...], preferred_element_type=jnp.float32) + b2_ref[...]
    h2 = jnp.maximum(h2, 0.0).astype(jnp.bfloat16)

    # l3 (transposed): (A_pad, hidden) x (TILE_B, hidden) -> (A_pad, TILE_B)
    a = lax.dot_general(
        w3t_ref[...], h2,
        dimension_numbers=(((1,), (1,)), ((), ())),
        preferred_element_type=jnp.float32,
    ) + b3t_ref[...]
    out_ref[...] = (max_action * jnp.tanh(a)).astype(out_ref.dtype)


def actor_forward(state, params, max_action, *, tile_b=1024):
    """state: (B, state_dim); params: dict of W1,b1,W2,b2,W3,b3 (f32).

    Returns (B, action_dim) f32 actions = max_action * tanh(MLP(state)).
    """
    B, state_dim = state.shape
    hidden = params["W1"].shape[1]
    action_dim = params["W3"].shape[1]

    # --- batch tiling -------------------------------------------------------
    # Small batches: one full-extent tile (per-grid-step overhead dominates).
    # Larger batches: >=2 evenly-sized tiles, TILE_B a multiple of 128 so the
    # transposed output stores stay lane-dense, and the 'parallel' axis has
    # work for both TensorCores on v7x.
    B8 = _round_up(B, 8)
    if B8 <= 256:
        n_tiles = 1
        tile_batch = B8
    else:
        n_tiles = max(_cdiv(B, tile_b), 2)
        tile_batch = _round_up(_cdiv(B, n_tiles), 128)
        n_tiles = max(_cdiv(B, tile_batch), 2)
    B_pad = n_tiles * tile_batch
    if B_pad != B:
        state = jnp.pad(state, ((0, B_pad - B), (0, 0)))

    # --- transposed last layer: pad actions only to 8 sublanes --------------
    A_pad = _round_up(action_dim, 8)
    W3_T = jnp.pad(params["W3"].T, ((0, A_pad - action_dim), (0, 0)))          # (A_pad, hidden)
    b3_T = jnp.pad(params["b3"].reshape(action_dim, 1),
                   ((0, A_pad - action_dim), (0, 0)))                           # (A_pad, 1)

    # --- bf16 weights (f32 accumulation inside the kernel), f32 biases ------
    W1 = params["W1"].astype(jnp.bfloat16)
    W2 = params["W2"].astype(jnp.bfloat16)
    W3_T = W3_T.astype(jnp.bfloat16)
    b1 = params["b1"].astype(jnp.float32)
    b2 = params["b2"].astype(jnp.float32)
    b3_T = b3_T.astype(jnp.float32)

    max_action_arr = jnp.full((1, 1), max_action, dtype=jnp.float32)

    def resident(shape):  # weights/biases: DMA'd once, stay in VMEM
        return pl.BlockSpec(shape, lambda i: (0, 0))

    out = pl.pallas_call(
        _actor_kernel,
        out_shape=jax.ShapeDtypeStruct((A_pad, B_pad), jnp.float32),
        grid=(n_tiles,),
        in_specs=[
            pl.BlockSpec(memory_space=pltpu.MemorySpace.SMEM),          # max_action
            pl.BlockSpec((tile_batch, state_dim), lambda i: (i, 0)),    # state tile
            resident((state_dim, hidden)),                              # W1
            resident((1, hidden)),                                      # b1
            resident((hidden, hidden)),                                 # W2
            resident((1, hidden)),                                      # b2
            resident((A_pad, hidden)),                                  # W3^T (8-row pad)
            resident((A_pad, 1)),                                       # b3^T
        ],
        out_specs=pl.BlockSpec((A_pad, tile_batch), lambda i: (0, i)),
        compiler_params=pltpu.CompilerParams(
            dimension_semantics=("parallel",)),                         # v7x: 2 TCs
    )(max_action_arr, state, W1, b1, W2, b2, W3_T, b3_T)

    # Tiny (A_pad, B_pad) buffer -> cheap slice + transpose back to (B, action_dim).
    return out[:action_dim, :B].T


def init_params(key, state_dim, action_dim, hidden=256):
    """Deterministic synthetic init (Kaiming-uniform-ish scale, like nn.Linear)."""
    ks = jax.random.split(key, 6)

    def lin(kw, kb, fan_in, fan_out):
        bound = 1.0 / jnp.sqrt(jnp.float32(fan_in))
        W = jax.random.uniform(kw, (fan_in, fan_out), jnp.float32, -bound, bound)
        b = jax.random.uniform(kb, (1, fan_out), jnp.float32, -bound, bound)
        return W, b

    W1, b1 = lin(ks[0], ks[1], state_dim, hidden)
    W2, b2 = lin(ks[2], ks[3], hidden, hidden)
    W3, b3 = lin(ks[4], ks[5], hidden, action_dim)
    return {"W1": W1, "b1": b1, "W2": W2, "b2": b2, "W3": W3, "b3": b3}


def actor_reference(state, params, max_action):
    h1 = jax.nn.relu(state @ params["W1"] + params["b1"])
    h2 = jax.nn.relu(h1 @ params["W2"] + params["b2"])
    return max_action * jnp.tanh(h2 @ params["W3"] + params["b3"])


if __name__ == "__main__":
    key = jax.random.PRNGKey(0)
    k_params, k_state, k_state2 = jax.random.split(key, 3)

    state_dim = 16
    action_dim = 4
    max_action = 2.0
    params = init_params(k_params, state_dim, action_dim)

    # Small batch: single-tile path.
    batch = 8
    state = jax.random.normal(k_state, (batch, state_dim), jnp.float32)
    out = jax.block_until_ready(actor_forward(state, params, max_action))
    ref = actor_reference(state, params, max_action)
    assert out.shape == (batch, action_dim)
    # bf16 weight storage (f32 accumulation) -> bf16-level tolerance.
    assert jnp.allclose(out, ref, atol=3e-2, rtol=3e-2), "mismatch vs reference (B=8)"

    # Medium batch: exercises the multi-tile 'parallel' path (grid >= 2).
    batch2 = 300
    state2 = jax.random.normal(k_state2, (batch2, state_dim), jnp.float32)
    out2 = jax.block_until_ready(actor_forward(state2, params, max_action))
    ref2 = actor_reference(state2, params, max_action)
    assert out2.shape == (batch2, action_dim)
    assert jnp.allclose(out2, ref2, atol=3e-2, rtol=3e-2), "mismatch vs reference (B=300)"

    print("KERNEL_OK")
</pallas_src>

<mosaic_0001>
module attributes {stable_mosaic.version = 11 : i64} {
  func.func @_actor_kernel(%arg0: i32, %arg1: memref<1x1xf32, #tpu.memory_space<smem>>, %arg2: memref<8x16xf32, #tpu.memory_space<vmem>>, %arg3: memref<16x256xbf16, #tpu.memory_space<vmem>>, %arg4: memref<1x256xf32, #tpu.memory_space<vmem>>, %arg5: memref<256x256xbf16, #tpu.memory_space<vmem>>, %arg6: memref<1x256xf32, #tpu.memory_space<vmem>>, %arg7: memref<8x256xbf16, #tpu.memory_space<vmem>>, %arg8: memref<8x1xf32, #tpu.memory_space<vmem>>, %arg9: memref<8x8xf32, #tpu.memory_space<vmem>>) attributes {dimension_semantics = [#tpu.dimension_semantics<parallel>], iteration_bounds = array<i64: 1>, scalar_prefetch = 0 : i64, scratch_operands = 0 : i64, tpu.core_type = #tpu.core_type<tc>, window_params = [{transform_indices = @transform_0, window_bounds = array<i64: 1, 1>}, {transform_indices = @transform_1, window_bounds = array<i64: 8, 16>}, {pipeline_mode = #tpu.pipeline_mode<synchronous>, transform_indices = @transform_2, window_bounds = array<i64: 16, 256>}, {pipeline_mode = #tpu.pipeline_mode<synchronous>, transform_indices = @transform_3, window_bounds = array<i64: 1, 256>}, {pipeline_mode = #tpu.pipeline_mode<synchronous>, transform_indices = @transform_4, window_bounds = array<i64: 256, 256>}, {pipeline_mode = #tpu.pipeline_mode<synchronous>, transform_indices = @transform_5, window_bounds = array<i64: 1, 256>}, {pipeline_mode = #tpu.pipeline_mode<synchronous>, transform_indices = @transform_6, window_bounds = array<i64: 8, 256>}, {pipeline_mode = #tpu.pipeline_mode<synchronous>, transform_indices = @transform_7, window_bounds = array<i64: 8, 1>}, {transform_indices = @transform_8, window_bounds = array<i64: 8, 8>}]} {
    %c0 = arith.constant 0 : index
    %c0_0 = arith.constant 0 : index
    %0 = memref.load %arg1[%c0, %c0_0] : memref<1x1xf32, #tpu.memory_space<smem>>
    %c0_1 = arith.constant 0 : index
    %c0_2 = arith.constant 0 : index
    %1 = vector.load %arg2[%c0_1, %c0_2] : memref<8x16xf32, #tpu.memory_space<vmem>>, vector<8x16xf32>
    %2 = arith.truncf %1 : vector<8x16xf32> to vector<8x16xbf16>
    %c0_3 = arith.constant 0 : index
    %c0_4 = arith.constant 0 : index
    %3 = vector.load %arg3[%c0_3, %c0_4] : memref<16x256xbf16, #tpu.memory_space<vmem>>, vector<16x256xbf16>
    %cst = arith.constant dense<0.000000e+00> : vector<8x256xf32>
    %4 = tpu.matmul %2, %3, %cst {dimension_numbers = #tpu.dot_dimension_numbers<[1], [0], [0], [1], [0, 0, 1, 1], [], []>} : vector<8x16xbf16>, vector<16x256xbf16>, vector<8x256xf32> -> vector<8x256xf32>
    %c0_5 = arith.constant 0 : index
    %c0_6 = arith.constant 0 : index
    %5 = vector.load %arg4[%c0_5, %c0_6] : memref<1x256xf32, #tpu.memory_space<vmem>>, vector<1x256xf32>
    %6 = vector.broadcast %5 : vector<1x256xf32> to vector<8x256xf32>
    %7 = arith.addf %4, %6 : vector<8x256xf32>
    %cst_7 = arith.constant 0.000000e+00 : f32
    %8 = vector.broadcast %cst_7 : f32 to vector<8x256xf32>
    %9 = arith.maximumf %7, %8 : vector<8x256xf32>
    %10 = arith.truncf %9 : vector<8x256xf32> to vector<8x256xbf16>
    %c0_8 = arith.constant 0 : index
    %c0_9 = arith.constant 0 : index
    %11 = vector.load %arg5[%c0_8, %c0_9] : memref<256x256xbf16, #tpu.memory_space<vmem>>, vector<256x256xbf16>
    %cst_10 = arith.constant dense<0.000000e+00> : vector<8x256xf32>
    %12 = tpu.matmul %10, %11, %cst_10 {dimension_numbers = #tpu.dot_dimension_numbers<[1], [0], [0], [1], [0, 0, 1, 1], [], []>} : vector<8x256xbf16>, vector<256x256xbf16>, vector<8x256xf32> -> vector<8x256xf32>
    %c0_11 = arith.constant 0 : index
    %c0_12 = arith.constant 0 : index
    %13 = vector.load %arg6[%c0_11, %c0_12] : memref<1x256xf32, #tpu.memory_space<vmem>>, vector<1x256xf32>
    %14 = vector.broadcast %13 : vector<1x256xf32> to vector<8x256xf32>
    %15 = arith.addf %12, %14 : vector<8x256xf32>
    %cst_13 = arith.constant 0.000000e+00 : f32
    %16 = vector.broadcast %cst_13 : f32 to vector<8x256xf32>
    %17 = arith.maximumf %15, %16 : vector<8x256xf32>
    %18 = arith.truncf %17 : vector<8x256xf32> to vector<8x256xbf16>
    %c0_14 = arith.constant 0 : index
    %c0_15 = arith.constant 0 : index
    %19 = vector.load %arg7[%c0_14, %c0_15] : memref<8x256xbf16, #tpu.memory_space<vmem>>, vector<8x256xbf16>
    %cst_16 = arith.constant dense<0.000000e+00> : vector<8x8xf32>
    %20 = tpu.matmul %19, %18, %cst_16 {dimension_numbers = #tpu.dot_dimension_numbers<[1], [1], [0], [0], [0, 0, 1, 0], [], []>} : vector<8x256xbf16>, vector<8x256xbf16>, vector<8x8xf32> -> vector<8x8xf32>
    %c0_17 = arith.constant 0 : index
    %c0_18 = arith.constant 0 : index
    %21 = vector.load %arg8[%c0_17, %c0_18] : memref<8x1xf32, #tpu.memory_space<vmem>>, vector<8x1xf32>
    %22 = vector.broadcast %21 : vector<8x1xf32> to vector<8x8xf32>
    %23 = arith.addf %20, %22 : vector<8x8xf32>
    %24 = math.tanh %23 : vector<8x8xf32>
    %25 = vector.broadcast %0 : f32 to vector<8x8xf32>
    %26 = arith.mulf %25, %24 : vector<8x8xf32>
    %c0_19 = arith.constant 0 : index
    %c0_20 = arith.constant 0 : index
    %27 = vector.load %arg9[%c0_19, %c0_20] : memref<8x8xf32, #tpu.memory_space<vmem>>, vector<8x8xf32>
    tpu.vector_store %arg9[%c0_19, %c0_20], %26 {strides = array<i32>} : memref<8x8xf32, #tpu.memory_space<vmem>>, vector<8x8xf32>,
    return
  }
  func.func @transform_0(%arg0: i32) -> (i32, i32) {
    %c0_i32 = arith.constant 0 : i32
    %c0_i32_0 = arith.constant 0 : i32
    %c0_i32_1 = arith.constant 0 : i32
    return %c0_i32, %c0_i32_0 : i32, i32
  }
  func.func @transform_1(%arg0: i32) -> (i32, i32) {
    %c0_i32 = arith.constant 0 : i32
    %c0_i32_0 = arith.constant 0 : i32
    return %arg0, %c0_i32 : i32, i32
  }
  func.func @transform_2(%arg0: i32) -> (i32, i32) {
    %c0_i32 = arith.constant 0 : i32
    %c0_i32_0 = arith.constant 0 : i32
    %c0_i32_1 = arith.constant 0 : i32
    return %c0_i32, %c0_i32_0 : i32, i32
  }
  func.func @transform_3(%arg0: i32) -> (i32, i32) {
    %c0_i32 = arith.constant 0 : i32
    %c0_i32_0 = arith.constant 0 : i32
    %c0_i32_1 = arith.constant 0 : i32
    return %c0_i32, %c0_i32_0 : i32, i32
  }
  func.func @transform_4(%arg0: i32) -> (i32, i32) {
    %c0_i32 = arith.constant 0 : i32
    %c0_i32_0 = arith.constant 0 : i32
    %c0_i32_1 = arith.constant 0 : i32
    return %c0_i32, %c0_i32_0 : i32, i32
  }
  func.func @transform_5(%arg0: i32) -> (i32, i32) {
    %c0_i32 = arith.constant 0 : i32
    %c0_i32_0 = arith.constant 0 : i32
    %c0_i32_1 = arith.constant 0 : i32
    return %c0_i32, %c0_i32_0 : i32, i32
  }
  func.func @transform_6(%arg0: i32) -> (i32, i32) {
    %c0_i32 = arith.constant 0 : i32
    %c0_i32_0 = arith.constant 0 : i32
    %c0_i32_1 = arith.constant 0 : i32
    return %c0_i32, %c0_i32_0 : i32, i32
  }
  func.func @transform_7(%arg0: i32) -> (i32, i32) {
    %c0_i32 = arith.constant 0 : i32
    %c0_i32_0 = arith.constant 0 : i32
    %c0_i32_1 = arith.constant 0 : i32
    return %c0_i32, %c0_i32_0 : i32, i32
  }
  func.func @transform_8(%arg0: i32) -> (i32, i32) {
    %c0_i32 = arith.constant 0 : i32
    %c0_i32_0 = arith.constant 0 : i32
    return %c0_i32, %arg0 : i32, i32
  }
}

</mosaic_0001>

<llo_original>
// kernel: tpu_custom_call.1
$region0: #{tpu_custom_call.1}
  #allocation0 [shape = 'u32[]', space=smem, size = 0x4, offset = 0x4, fixed_abs, tag = 'smem constant byte address 0x4 - core index']
  #allocation1 [shape = 'u32[144,128]{1,0:T(1,128)}', space=vmem, size = 0x12000, scoped, tag = 'internal scratch']
  #allocation2 [shape = 'f32[1,1]{1,0:T(1,128)S(6)}', space=smem, size = 0x200, scoped, tag = 'scoped memory for tpu_custom_call.1']
  %s0 = inlined_call_operand.<no memory space> [shape: f32[1,1], index: 0, kind: input, shape index: {}]
  %s1 = inlined_call_operand.hbm [shape: f32[8,16], index: 1, kind: input, shape index: {}]
  %s2 = inlined_call_operand.vmem [shape: bf16[16,256], index: 2, kind: input, shape index: {}]
  %s3 = inlined_call_operand.hbm [shape: f32[1,256], index: 3, kind: input, shape index: {}]
  %s4 = inlined_call_operand.hbm [shape: bf16[256,256], index: 4, kind: input, shape index: {}]
  %s5 = inlined_call_operand.vmem [shape: f32[1,256], index: 5, kind: input, shape index: {}]
  %s6 = inlined_call_operand.vmem [shape: bf16[8,256], index: 6, kind: input, shape index: {}]
  %s7 = inlined_call_operand.vmem [shape: f32[8,1], index: 7, kind: input, shape index: {}]
  %s8 = inlined_call_operand.hbm [shape: f32[8,8], index: 8, kind: output, shape index: {}]
  %s9 = sld [smem:[#allocation0]]
  $region54: #{tpu_custom_call.1} parent=0
    _
  %s11 = ssub.s32 1, %s9
  %s12 = scalar_select 0, %s11, %s9
  %13 = sst [smem:[#allocation2]] %s0
  $region1: #{tpu_custom_call.1} parent=0
    #allocation3 [shape = 'u8[4096]{0}', space=vmem, size = 0x1000, scoped, tag = 'input window, operand 1, single buffered']
    #allocation4 [shape = 's32[1]{0}', space=sflag, size = 0x4, scoped, tag = 'scoped memory for tpu_custom_call.1']
    #allocation5 [shape = 's32[1]{0}', space=sflag, size = 0x4, scoped, tag = 'scoped memory for tpu_custom_call.1']
    #allocation6 [shape = 'u8[1024]{0}', space=vmem, size = 0x400, scoped, tag = 'input window, operand 3, single buffered']
    #allocation7 [shape = 's32[1]{0}', space=sflag, size = 0x4, scoped, tag = 'scoped memory for tpu_custom_call.1']
    #allocation8 [shape = 'u8[131072]{0}', space=vmem, size = 0x20000, scoped, tag = 'input window, operand 4, single buffered']
    #allocation9 [shape = 'u8[4096]{0}', space=vmem, size = 0x1000, scoped, tag = 'output window, operand 0, single buffered']
    %14 = vsyncpa [#allocation4], 0
    %15 = vsyncpa [#allocation7], 0
    %16 = vsyncpa [#allocation5], 0
    // Predicated region
    $region2: #{tpu_custom_call.1} parent=1 // pred_check
      _
    $region3: #{tpu_custom_call.1} parent=1 // pred_check_branch
      %18 = sbr.rel (0) target = $region5
    $region4: #{tpu_custom_call.1} parent=1 // pred_region
      _
    $region5: #{tpu_custom_call.1} parent=1 // pred_fallthru
      _
    // Predicated region
    $region6: #{tpu_custom_call.1} parent=1 // pred_check
      _
    $region7: #{tpu_custom_call.1} parent=1 // pred_check_branch
      %20 = sbr.rel (0) target = $region9
    $region8: #{tpu_custom_call.1} parent=1 // pred_region
      %s22 = ssub.s32 128, 128
      %23 = vsyncadd [#allocation4], %s22
      %s25 = sshll.u32 [#allocation3], 4
      %s26 = int_to_ptr.vmem [resolvable:$true] %s25
      %28 = dma.hbm_to_vmem [thread:$0]  %s1, 128, %s26, [#allocation4]
    $region9: #{tpu_custom_call.1} parent=1 // pred_fallthru
      _
    // Predicated region
    $region10: #{tpu_custom_call.1} parent=1 // pred_check
      _
    $region11: #{tpu_custom_call.1} parent=1 // pred_check_branch
      %30 = sbr.rel (0) target = $region13
    $region12: #{tpu_custom_call.1} parent=1 // pred_region
      _
    $region13: #{tpu_custom_call.1} parent=1 // pred_fallthru
      _
    // Predicated region
    $region14: #{tpu_custom_call.1} parent=1 // pred_check
      _
    $region15: #{tpu_custom_call.1} parent=1 // pred_check_branch
      %32 = sbr.rel (0) target = $region17
    $region16: #{tpu_custom_call.1} parent=1 // pred_region
      %s34 = ssub.s32 32, 32
      %35 = vsyncadd [#allocation7], %s34
      %s37 = sshll.u32 [#allocation6], 4
      %s38 = int_to_ptr.vmem [resolvable:$true] %s37
      %40 = dma.hbm_to_vmem [thread:$0]  %s3, 32, %s38, [#allocation7]
    $region17: #{tpu_custom_call.1} parent=1 // pred_fallthru
      _
    // Predicated region
    $region18: #{tpu_custom_call.1} parent=1 // pred_check
      _
    $region19: #{tpu_custom_call.1} parent=1 // pred_check_branch
      %42 = sbr.rel (0) target = $region21
    $region20: #{tpu_custom_call.1} parent=1 // pred_region
      %s44 = ssub.s32 4096, 4096
      %45 = vsyncadd [#allocation7], %s44
      %s46 = sshll.u32 [#allocation8], 4
      %s47 = int_to_ptr.vmem [resolvable:$true] %s46
      %52 = dma.hbm_to_vmem [thread:$0]  %s4, 4096, %s47, [#allocation7], 128, 128, 8
    $region21: #{tpu_custom_call.1} parent=1 // pred_fallthru
      _
    // Predicated region
    $region22: #{tpu_custom_call.1} parent=1 // pred_check
      _
    $region23: #{tpu_custom_call.1} parent=1 // pred_check_branch
      %54 = sbr.rel (0) target = $region25
    $region24: #{tpu_custom_call.1} parent=1 // pred_region
      _
    $region25: #{tpu_custom_call.1} parent=1 // pred_fallthru
      _
    // Predicated region
    $region26: #{tpu_custom_call.1} parent=1 // pred_check
      _
    $region27: #{tpu_custom_call.1} parent=1 // pred_check_branch
      %56 = sbr.rel (0) target = $region29
    $region28: #{tpu_custom_call.1} parent=1 // pred_region
      _
    $region29: #{tpu_custom_call.1} parent=1 // pred_fallthru
      _
    // Predicated region
    $region30: #{tpu_custom_call.1} parent=1 // pred_check
      _
    $region31: #{tpu_custom_call.1} parent=1 // pred_check_branch
      %58 = sbr.rel (0) target = $region33
    $region32: #{tpu_custom_call.1} parent=1 // pred_region
      _
    $region33: #{tpu_custom_call.1} parent=1 // pred_fallthru
      _
    // Predicated region
    $region34: #{tpu_custom_call.1} parent=1 // pred_check
      _
    $region35: #{tpu_custom_call.1} parent=1 // pred_check_branch
      %60 = sbr.rel (0) target = $region37
    $region36: #{tpu_custom_call.1} parent=1 // pred_region
      %61 = dma.done [#allocation4], 128
    $region37: #{tpu_custom_call.1} parent=1 // pred_fallthru
      _
    // Predicated region
    $region38: #{tpu_custom_call.1} parent=1 // pred_check
      _
    $region39: #{tpu_custom_call.1} parent=1 // pred_check_branch
      %63 = sbr.rel (0) target = $region41
    $region40: #{tpu_custom_call.1} parent=1 // pred_region
      %64 = dma.done [#allocation7], 32
    $region41: #{tpu_custom_call.1} parent=1 // pred_fallthru
      _
    // Predicated region
    $region42: #{tpu_custom_call.1} parent=1 // pred_check
      _
    $region43: #{tpu_custom_call.1} parent=1 // pred_check_branch
      %66 = sbr.rel (0) target = $region45
    $region44: #{tpu_custom_call.1} parent=1 // pred_region
      %67 = dma.done [#allocation7], 4096
    $region45: #{tpu_custom_call.1} parent=1 // pred_fallthru
      _
    %s69 = sld [smem:[#allocation2]]
    %v70 = vld [vmem:[#allocation3] sm:$0xff]
    %v71 = vpack.c.bf16 %v70, %v70
    %v72 = vld [vmem:[%s2] sm:$0xff]
    %v73 = vld [vmem:[%s2 + $0x8] sm:$0xff]
    %v74 = vld [vmem:[#allocation6] sm:$0x3]
    %v76 = vlaneseq
    %v77 = vshrl.u32 %v76, 7
    %v78 = vsub.s32 0, %v77
    %v79 = vrot.slane %v74, %v78
    %v80 = vlaneseq
    %v81 = vshrl.u32 %v80, 7
    %v82 = vsub.s32 1, %v81
    %v83 = vrot.slane %v74, %v82
    %v88 = vunpack.c.l.b16 %v72
    %v89 = vunpack.c.h.b16 %v72
    %v90 = vunpack.c.l.b16 %v73
    %v91 = vunpack.c.h.b16 %v73
    %v92 = vpack.c.b16 %v90, %v88
    %v93 = vpack.c.b16 %v91, %v89
    %vm96 = vcmask 130048
    %v98 = vsel %vm96, %v71, 0
    %100 = vmatprep.subr.bf16.mxu0 %v93
    %101 = vmatpush1.bf16.msra.mxu0 %v92
    %102 = vmatprep.subr.bf16.mxu0 0
    %103 = vmatpush1.bf16.msra.mxu0 0
    %104 = vmatprep.subr.bf16.mxu0 0
    %105 = vmatpush1.bf16.msra.mxu0 0
    %106 = vmatprep.subr.bf16.mxu0 0
    %107 = vmatpush1.bf16.msra.mxu0 0
    %108 = vmatprep.subr.bf16.mxu0 0
    %109 = vmatpush1.bf16.msra.mxu0 0
    %110 = vmatprep.subr.bf16.mxu0 0
    %111 = vmatpush1.bf16.msra.mxu0 0
    %112 = vmatprep.subr.bf16.mxu0 0
    %113 = vmatpush1.bf16.msra.mxu0 0
    %114 = vmatprep.subr.bf16.mxu0 0
    %115 = vmatpush1.bf16.msra.mxu0 0
    %116 = vmatprep.subr.bf16.mxu0 0
    %117 = vmatpush1.bf16.msra.mxu0 0
    %118 = vmatprep.subr.bf16.mxu0 0
    %119 = vmatpush1.bf16.msra.mxu0 0
    %120 = vmatprep.subr.bf16.mxu0 0
    %121 = vmatpush1.bf16.msra.mxu0 0
    %122 = vmatprep.subr.bf16.mxu0 0
    %123 = vmatpush1.bf16.msra.mxu0 0
    %124 = vmatprep.subr.bf16.mxu0 0
    %125 = vmatpush1.bf16.msra.mxu0 0
    %126 = vmatprep.subr.bf16.mxu0 0
    %127 = vmatpush1.bf16.msra.mxu0 0
    %128 = vmatprep.subr.bf16.mxu0 0
    %129 = vmatpush1.bf16.msra.mxu0 0
    %130 = vmatprep.subr.bf16.mxu0 0
    %131 = vmatpush1.bf16.msra.mxu0 0
    %132 = vmatprep.mubr.bf16.mxu0 0
    %133 = vmatmul.mubr.bf16.gmra.mrb[0].mxu0 %v98
    %v134 = vpop.f32.mrb[0].mxu0
    %v135 = vadd.f32 %v79, %v134
    %v136 = vpop.f32.mrb[0].mxu0
    %v137 = vadd.f32 %v83, %v136
    %v138 = vpop.f32.mrb[0].mxu0
    %v139 = vpop.f32.mrb[0].mxu0
    %140 = vdwg.mxu0
    %v141 = vmax.f32 %v135, 0.0
    %v142 = vmax.f32 %v137, 0.0
    %v143 = vpack.c.bf16 %v141, %v141
    %v144 = vpack.c.bf16 %v142, %v142
    %v145 = vld [vmem:[#allocation8] sm:$0xff]
    %v146 = vld [vmem:[#allocation8 + $0x8] sm:$0xff]
    %v147 = vld [vmem:[#allocation8 + $0x10] sm:$0xff]
    %v148 = vld [vmem:[#allocation8 + $0x18] sm:$0xff]
    %v149 = vld [vmem:[#allocation8 + $0x20] sm:$0xff]
    %v150 = vld [vmem:[#allocation8 + $0x28] sm:$0xff]
    %v151 = vld [vmem:[#allocation8 + $0x30] sm:$0xff]
    %v152 = vld [vmem:[#allocation8 + $0x38] sm:$0xff]
    %v153 = vld [vmem:[#allocation8 + $0x40] sm:$0xff]
    %v154 = vld [vmem:[#allocation8 + $0x48] sm:$0xff]
    %v155 = vld [vmem:[#allocation8 + $0x50] sm:$0xff]
    %v156 = vld [vmem:[#allocation8 + $0x58] sm:$0xff]
    %v157 = vld [vmem:[#allocation8 + $0x60] sm:$0xff]
    %v158 = vld [vmem:[#allocation8 + $0x68] sm:$0xff]
    %v159 = vld [vmem:[#allocation8 + $0x70] sm:$0xff]
    %v160 = vld [vmem:[#allocation8 + $0x78] sm:$0xff]
    %v161 = vld [vmem:[#allocation8 + $0x80] sm:$0xff]
    %v162 = vld [vmem:[#allocation8 + $0x88] sm:$0xff]
    %v163 = vld [vmem:[#allocation8 + $0x90] sm:$0xff]
    %v164 = vld [vmem:[#allocation8 + $0x98] sm:$0xff]
    %v165 = vld [vmem:[#allocation8 + $0xa0] sm:$0xff]
    %v166 = vld [vmem:[#allocation8 + $0xa8] sm:$0xff]
    %v167 = vld [vmem:[#allocation8 + $0xb0] sm:$0xff]
    %v168 = vld [vmem:[#allocation8 + $0xb8] sm:$0xff]
    %v169 = vld [vmem:[#allocation8 + $0xc0] sm:$0xff]
    %v170 = vld [vmem:[#allocation8 + $0xc8] sm:$0xff]
    %v171 = vld [vmem:[#allocation8 + $0xd0] sm:$0xff]
    %v172 = vld [vmem:[#allocation8 + $0xd8] sm:$0xff]
    %v173 = vld [vmem:[#allocation8 + $0xe0] sm:$0xff]
    %v174 = vld [vmem:[#allocation8 + $0xe8] sm:$0xff]
    %v175 = vld [vmem:[#allocation8 + $0xf0] sm:$0xff]
    %v176 = vld [vmem:[#allocation8 + $0xf8] sm:$0xff]
    %v177 = vld [vmem:[%s5] sm:$0x3]
    %v179 = vlaneseq
    %v180 = vshrl.u32 %v179, 7
    %v181 = vsub.s32 0, %v180
    %v182 = vrot.slane %v177, %v181
    %v183 = vlaneseq
    %v184 = vshrl.u32 %v183, 7
    %v185 = vsub.s32 1, %v184
    %v186 = vrot.slane %v177, %v185
    %v221 = vunpack.c.l.b16 %v145
    %v222 = vunpack.c.h.b16 %v145
    %v223 = vunpack.c.l.b16 %v146
    %v224 = vunpack.c.h.b16 %v146
    %v225 = vunpack.c.l.b16 %v147
    %v226 = vunpack.c.h.b16 %v147
    %v227 = vunpack.c.l.b16 %v148
    %v228 = vunpack.c.h.b16 %v148
    %v229 = vunpack.c.l.b16 %v149
    %v230 = vunpack.c.h.b16 %v149
    %v231 = vunpack.c.l.b16 %v150
    %v232 = vunpack.c.h.b16 %v150
    %v233 = vunpack.c.l.b16 %v151
    %v234 = vunpack.c.h.b16 %v151
    %v235 = vunpack.c.l.b16 %v152
    %v236 = vunpack.c.h.b16 %v152
    %v237 = vunpack.c.l.b16 %v153
    %v238 = vunpack.c.h.b16 %v153
    %v239 = vunpack.c.l.b16 %v154
    %v240 = vunpack.c.h.b16 %v154
    %v241 = vunpack.c.l.b16 %v155
    %v242 = vunpack.c.h.b16 %v155
    %v243 = vunpack.c.l.b16 %v156
    %v244 = vunpack.c.h.b16 %v156
    %v245 = vunpack.c.l.b16 %v157
    %v246 = vunpack.c.h.b16 %v157
    %v247 = vunpack.c.l.b16 %v158
    %v248 = vunpack.c.h.b16 %v158
    %v249 = vunpack.c.l.b16 %v159
    %v250 = vunpack.c.h.b16 %v159
    %v251 = vunpack.c.l.b16 %v160
    %v252 = vunpack.c.h.b16 %v160
    %v253 = vunpack.c.l.b16 %v161
    %v254 = vunpack.c.h.b16 %v161
    %v255 = vunpack.c.l.b16 %v162
    %v256 = vunpack.c.h.b16 %v162
    %v257 = vunpack.c.l.b16 %v163
    %v258 = vunpack.c.h.b16 %v163
    %v259 = vunpack.c.l.b16 %v164
    %v260 = vunpack.c.h.b16 %v164
    %v261 = vunpack.c.l.b16 %v165
    %v262 = vunpack.c.h.b16 %v165
    %v263 = vunpack.c.l.b16 %v166
    %v264 = vunpack.c.h.b16 %v166
    %v265 = vunpack.c.l.b16 %v167
    %v266 = vunpack.c.h.b16 %v167
    %v267 = vunpack.c.l.b16 %v168
    %v268 = vunpack.c.h.b16 %v168
    %v269 = vunpack.c.l.b16 %v169
    %v270 = vunpack.c.h.b16 %v169
    %v271 = vunpack.c.l.b16 %v170
    %v272 = vunpack.c.h.b16 %v170
    %v273 = vunpack.c.l.b16 %v171
    %v274 = vunpack.c.h.b16 %v171
    %v275 = vunpack.c.l.b16 %v172
    %v276 = vunpack.c.h.b16 %v172
    %v277 = vunpack.c.l.b16 %v173
    %v278 = vunpack.c.h.b16 %v173
    %v279 = vunpack.c.l.b16 %v174
    %v280 = vunpack.c.h.b16 %v174
    %v281 = vunpack.c.l.b16 %v175
    %v282 = vunpack.c.h.b16 %v175
    %v283 = vunpack.c.l.b16 %v176
    %v284 = vunpack.c.h.b16 %v176
    %v285 = vpack.c.b16 %v223, %v221
    %v286 = vpack.c.b16 %v224, %v222
    %v287 = vpack.c.b16 %v227, %v225
    %v288 = vpack.c.b16 %v228, %v226
    %v289 = vpack.c.b16 %v231, %v229
    %v290 = vpack.c.b16 %v232, %v230
    %v291 = vpack.c.b16 %v235, %v233
    %v292 = vpack.c.b16 %v236, %v234
    %v293 = vpack.c.b16 %v239, %v237
    %v294 = vpack.c.b16 %v240, %v238
    %v295 = vpack.c.b16 %v243, %v241
    %v296 = vpack.c.b16 %v244, %v242
    %v297 = vpack.c.b16 %v247, %v245
    %v298 = vpack.c.b16 %v248, %v246
    %v299 = vpack.c.b16 %v251, %v249
    %v300 = vpack.c.b16 %v252, %v250
    %v301 = vpack.c.b16 %v255, %v253
    %v302 = vpack.c.b16 %v256, %v254
    %v303 = vpack.c.b16 %v259, %v257
    %v304 = vpack.c.b16 %v260, %v258
    %v305 = vpack.c.b16 %v263, %v261
    %v306 = vpack.c.b16 %v264, %v262
    %v307 = vpack.c.b16 %v267, %v265
    %v308 = vpack.c.b16 %v268, %v266
    %v309 = vpack.c.b16 %v271, %v269
    %v310 = vpack.c.b16 %v272, %v270
    %v311 = vpack.c.b16 %v275, %v273
    %v312 = vpack.c.b16 %v276, %v274
    %v313 = vpack.c.b16 %v279, %v277
    %v314 = vpack.c.b16 %v280, %v278
    %v315 = vpack.c.b16 %v283, %v281
    %v316 = vpack.c.b16 %v284, %v282
    %349 = vmatprep.subr.bf16.mxu0 %v286
    %350 = vmatpush1.bf16.msra.mxu0 %v285
    %351 = vmatprep.subr.bf16.mxu0 %v288
    %352 = vmatpush1.bf16.msra.mxu0 %v287
    %353 = vmatprep.subr.bf16.mxu0 %v290
    %354 = vmatpush1.bf16.msra.mxu0 %v289
    %355 = vmatprep.subr.bf16.mxu0 %v292
    %356 = vmatpush1.bf16.msra.mxu0 %v291
    %357 = vmatprep.subr.bf16.mxu0 %v294
    %358 = vmatpush1.bf16.msra.mxu0 %v293
    %359 = vmatprep.subr.bf16.mxu0 %v296
    %360 = vmatpush1.bf16.msra.mxu0 %v295
    %361 = vmatprep.subr.bf16.mxu0 %v298
    %362 = vmatpush1.bf16.msra.mxu0 %v297
    %363 = vmatprep.subr.bf16.mxu0 %v300
    %364 = vmatpush1.bf16.msra.mxu0 %v299
    %365 = vmatprep.subr.bf16.mxu0 %v302
    %366 = vmatpush1.bf16.msra.mxu0 %v301
    %367 = vmatprep.subr.bf16.mxu0 %v304
    %368 = vmatpush1.bf16.msra.mxu0 %v303
    %369 = vmatprep.subr.bf16.mxu0 %v306
    %370 = vmatpush1.bf16.msra.mxu0 %v305
    %371 = vmatprep.subr.bf16.mxu0 %v308
    %372 = vmatpush1.bf16.msra.mxu0 %v307
    %373 = vmatprep.subr.bf16.mxu0 %v310
    %374 = vmatpush1.bf16.msra.mxu0 %v309
    %375 = vmatprep.subr.bf16.mxu0 %v312
    %376 = vmatpush1.bf16.msra.mxu0 %v311
    %377 = vmatprep.subr.bf16.mxu0 %v314
    %378 = vmatpush1.bf16.msra.mxu0 %v313
    %379 = vmatprep.subr.bf16.mxu0 %v316
    %380 = vmatpush1.bf16.msra.mxu0 %v315
    %381 = vmatprep.mubr.bf16.mxu0 %v144
    %382 = vmatmul.mubr.bf16.gmra.mrb[0].mxu0 %v143
    %v383 = vpop.f32.mrb[0].mxu0
    %v384 = vadd.f32 %v182, %v383
    %v385 = vpop.f32.mrb[0].mxu0
    %v386 = vadd.f32 %v186, %v385
    %v387 = vpop.f32.mrb[0].mxu0
    %v388 = vpop.f32.mrb[0].mxu0
    %389 = vdwg.mxu0
    %v390 = vmax.f32 %v384, 0.0
    %v391 = vmax.f32 %v386, 0.0
    %v392 = vpack.c.bf16 %v390, %v390
    %v393 = vpack.c.bf16 %v391, %v391
    %v394 = vld [vmem:[%s6] sm:$0xff]
    %v395 = vld [vmem:[%s7] sm:$0xff]
    %397 = vset.pattern.permute.xlu0 0
    %398 = vperm.xlu0 %397, %v395
    %v399 = vpop.permute.xlu0 %398
    %v402 = vunpack.c.l.b16 %v394
    %v403 = vunpack.c.h.b16 %v394
    %v404 = vpack.c.b16 %v402, %v402
    %v405 = vpack.c.b16 %v403, %v403
    %408 = vmatprep.subr.bf16.mxu0 %v393
    %409 = vmatpush1.bf16.xpose.msra.mxu0 %v392
    %410 = vmatprep.subr.bf16.mxu0 0
    %411 = vmatpush1.bf16.xpose.msra.mxu0 0
    %412 = vmatprep.subr.bf16.mxu0 0
    %413 = vmatpush1.bf16.xpose.msra.mxu0 0
    %414 = vmatprep.subr.bf16.mxu0 0
    %415 = vmatpush1.bf16.xpose.msra.mxu0 0
    %416 = vmatprep.subr.bf16.mxu0 0
    %417 = vmatpush1.bf16.xpose.msra.mxu0 0
    %418 = vmatprep.subr.bf16.mxu0 0
    %419 = vmatpush1.bf16.xpose.msra.mxu0 0
    %420 = vmatprep.subr.bf16.mxu0 0
    %421 = vmatpush1.bf16.xpose.msra.mxu0 0
    %422 = vmatprep.subr.bf16.mxu0 0
    %423 = vmatpush1.bf16.xpose.msra.mxu0 0
    %424 = vmatprep.subr.bf16.mxu0 0
    %425 = vmatpush1.bf16.xpose.msra.mxu0 0
    %426 = vmatprep.subr.bf16.mxu0 0
    %427 = vmatpush1.bf16.xpose.msra.mxu0 0
    %428 = vmatprep.subr.bf16.mxu0 0
    %429 = vmatpush1.bf16.xpose.msra.mxu0 0
    %430 = vmatprep.subr.bf16.mxu0 0
    %431 = vmatpush1.bf16.xpose.msra.mxu0 0
    %432 = vmatprep.subr.bf16.mxu0 0
    %433 = vmatpush1.bf16.xpose.msra.mxu0 0
    %434 = vmatprep.subr.bf16.mxu0 0
    %435 = vmatpush1.bf16.xpose.msra.mxu0 0
    %436 = vmatprep.subr.bf16.mxu0 0
    %437 = vmatpush1.bf16.xpose.msra.mxu0 0
    %438 = vmatprep.subr.bf16.mxu0 0
    %439 = vmatpush1.bf16.xpose.msra.mxu0 0
    %440 = vmatprep.mubr.bf16.mxu0 %v405
    %441 = vmatmul.mubr.bf16.gmra.mrb[0].mxu0 %v404
    %v442 = vpop.f32.mrb[0].mxu0
    %v443 = vadd.f32 %v399, %v442
    %v444 = vpop.f32.mrb[0].mxu0
    %v445 = vpop.f32.mrb[0].mxu0
    %v446 = vpop.f32.mrb[0].mxu0
    %447 = vdwg.mxu0
    %v448 = vtanh.pop %v443
    %v449 = vstv %s69
    %v450 = vmul.f32 %v449, %v448
    %vm451 = vcmask 64512
    %452 = vst.msk [vmem:[#allocation9] sm:$0xff] %vm451, %v450
    // Predicated region
    $region46: #{tpu_custom_call.1} parent=1 // pred_check
      _
    $region47: #{tpu_custom_call.1} parent=1 // pred_check_branch
      %454 = sbr.rel (0) target = $region49
    $region48: #{tpu_custom_call.1} parent=1 // pred_region
      %s456 = ssub.s32 128, 128
      %457 = vsyncadd [#allocation5], %s456
      %s459 = sshll.u32 [#allocation9], 4
      %s460 = int_to_ptr.vmem [resolvable:$true] %s459
      %462 = dma.vmem_to_hbm [thread:$0]  %s460, 128, %s8, [#allocation5]
    $region49: #{tpu_custom_call.1} parent=1 // pred_fallthru
      _
    // Predicated region
    $region50: #{tpu_custom_call.1} parent=1 // pred_check
      _
    $region51: #{tpu_custom_call.1} parent=1 // pred_check_branch
      %464 = sbr.rel (0) target = $region53
    $region52: #{tpu_custom_call.1} parent=1 // pred_region
      %465 = dma.done [#allocation5], 128
    $region53: #{tpu_custom_call.1} parent=1 // pred_fallthru
      _
    %466 = vsyncpa [#allocation4], 1
    %467 = vsyncpa [#allocation7], 1
    %468 = vsyncpa [#allocation5], 1

</llo_original>
